<compile_context>
chip_gen: v5e
topology: v5e:2x2
jax: 0.10.0
libtpu: 0.0.40
codegen_flags: <defaults>
</compile_context>

<pallas_src>
import math
from functools import partial

import jax
import jax.numpy as jnp
from jax import lax
from jax.experimental import pallas as pl
from jax.experimental.pallas import tpu as pltpu


LANE = 128
NUM_CONT = 4  # number of continuous feature columns in x


def _round_up(n, m):
    return ((n + m - 1) // m) * m


# ----------------------------------------------------------------------------
# Shared math: identical code runs inside the Pallas kernel and as the
# bf16-matched JAX reference (guarantees the check compares the same algorithm).
# ----------------------------------------------------------------------------
def _fused_mlp_math(xp, w1, w2, w3, *, seg_offsets, ones_in_lane, hid_lane,
                    compute_dtype):
    bt, in_p = xp.shape
    col_in = lax.broadcasted_iota(jnp.int32, (bt, in_p), 1)

    # Multi-hot row: one-hot segment per categorical feature + bias "ones" lane.
    hot = col_in == ones_in_lane
    for j, off in enumerate(seg_offsets):
        idx = xp[:, NUM_CONT + j:NUM_CONT + j + 1].astype(jnp.int32)  # [bt, 1]
        hot = jnp.logical_or(hot, col_in == idx + off)

    # Lanes 0..3: continuous features; remaining lanes: multi-hot encoding.
    z = jnp.where(col_in < NUM_CONT, xp, jnp.where(hot, 1.0, 0.0))
    z = z.astype(compute_dtype)

    # Layer 1 (embeddings + concat + linear + bias all folded into w1).
    h1 = jnp.maximum(jnp.dot(z, w1, preferred_element_type=jnp.float32), 0.0)
    col_h = lax.broadcasted_iota(jnp.int32, h1.shape, 1)
    h1 = jnp.where(col_h == hid_lane, 1.0, h1).astype(compute_dtype)

    # Layer 2 (bias folded via ones lane).
    h2 = jnp.maximum(jnp.dot(h1, w2, preferred_element_type=jnp.float32), 0.0)
    h2 = jnp.where(col_h == hid_lane, 1.0, h2).astype(compute_dtype)

    # Output layer (bias folded via ones lane); padded lanes stay zero.
    return jnp.dot(h2, w3, preferred_element_type=jnp.float32)


def _fused_mlp_kernel(x_ref, w1_ref, w2_ref, w3_ref, o_ref, *, seg_offsets,
                      ones_in_lane, hid_lane, compute_dtype):
    out = _fused_mlp_math(
        x_ref[...], w1_ref[...], w2_ref[...], w3_ref[...],
        seg_offsets=seg_offsets, ones_in_lane=ones_in_lane,
        hid_lane=hid_lane, compute_dtype=compute_dtype)
    o_ref[...] = out.astype(o_ref.dtype)


def fused_mlp_pallas(xp, w1c, w2c, w3c, *, seg_offsets, ones_in_lane, hid_lane,
                     batch_tile, compute_dtype):
    Bp, IN_P = xp.shape
    HID_P = w1c.shape[1]
    OUT_P = w3c.shape[1]
    assert Bp % batch_tile == 0 and batch_tile % 8 == 0
    grid = (Bp // batch_tile,)

    kernel = partial(_fused_mlp_kernel, seg_offsets=tuple(seg_offsets),
                     ones_in_lane=ones_in_lane, hid_lane=hid_lane,
                     compute_dtype=compute_dtype)

    return pl.pallas_call(
        kernel,
        out_shape=jax.ShapeDtypeStruct((Bp, OUT_P), jnp.float32),
        grid_spec=pltpu.PrefetchScalarGridSpec(
            num_scalar_prefetch=0,
            grid=grid,
            in_specs=[
                pl.BlockSpec((batch_tile, IN_P), lambda i: (i, 0)),  # padded x
                pl.BlockSpec((IN_P, HID_P), lambda i: (0, 0)),       # folded W1
                pl.BlockSpec((HID_P, HID_P), lambda i: (0, 0)),      # folded W2
                pl.BlockSpec((HID_P, OUT_P), lambda i: (0, 0)),      # folded W3
            ],
            out_specs=pl.BlockSpec((batch_tile, OUT_P), lambda i: (i, 0)),
        ),
        compiler_params=pltpu.CompilerParams(
            dimension_semantics=("parallel",),
        ),
    )(xp, w1c, w2c, w3c)


# ----------------------------------------------------------------------------
# Model: parameters (PyTorch-equivalent init) + folded/padded kernel params.
# ----------------------------------------------------------------------------
class NetworkDetectionModelPallas:
    MAX_BATCH_TILE = 512

    def __init__(self, key, output_dim,
                 embed_dim_bin, num_bin,
                 embed_dim_bout, num_bout,
                 embed_dim_pin, num_pin,
                 embed_dim_pout, num_pout,
                 embed_dim_proto, num_proto,
                 compute_dtype=jnp.bfloat16):
        self.input_dim = NUM_CONT + embed_dim_bin + embed_dim_bout \
            + embed_dim_pin + embed_dim_pout + embed_dim_proto
        self.hidden_dim = int(math.ceil((self.input_dim + 1) * 0.67))
        self.output_dim = output_dim
        self.compute_dtype = compute_dtype
        self._fwd_cache = {}

        keys = jax.random.split(key, 11)

        # Embedding tables (nn.Embedding default init ~ N(0, 1)).
        self.bin_embed = jax.random.normal(keys[0], (num_bin, embed_dim_bin), jnp.float32)
        self.bout_embed = jax.random.normal(keys[1], (num_bout, embed_dim_bout), jnp.float32)
        self.pin_embed = jax.random.normal(keys[2], (num_pin, embed_dim_pin), jnp.float32)
        self.pout_embed = jax.random.normal(keys[3], (num_pout, embed_dim_pout), jnp.float32)
        self.proto_embed = jax.random.normal(keys[4], (num_proto, embed_dim_proto), jnp.float32)

        # Linear layers stored as [in, out] so we compute x @ W + b.
        def linear_init(kw, kb, fan_in, fan_out):
            bound = 1.0 / math.sqrt(fan_in)
            w = jax.random.uniform(kw, (fan_in, fan_out), jnp.float32, -bound, bound)
            b = jax.random.uniform(kb, (fan_out,), jnp.float32, -bound, bound)
            return w, b

        self.w1, self.b1 = linear_init(keys[5], keys[6], self.input_dim, self.hidden_dim)
        self.w2, self.b2 = linear_init(keys[7], keys[8], self.hidden_dim, self.hidden_dim)
        self.w3, self.b3 = linear_init(keys[9], keys[10], self.hidden_dim, self.output_dim)

        self._build_folded_params()

    def _build_folded_params(self):
        hid, out_dim = self.hidden_dim, self.output_dim
        tables = [self.bin_embed, self.bout_embed, self.pin_embed,
                  self.pout_embed, self.proto_embed]
        embed_dims = [t.shape[1] for t in tables]

        # One-hot segment offsets inside the folded input row.
        seg_offsets, off = [], NUM_CONT
        for t in tables:
            seg_offsets.append(off)
            off += t.shape[0]
        self.seg_offsets = tuple(seg_offsets)
        self.ones_in_lane = off                       # bias lane of layer 1
        self.IN_P = _round_up(off + 1, LANE)          # lane-dense folded input width
        self.HID_P = _round_up(hid + 1, LANE)         # hidden + ones lane, padded
        self.OUT_P = _round_up(out_dim, LANE)

        # Folded layer-1 weight: continuous rows, (table @ W1_slice) per segment,
        # bias row, zero padding.  All in f32, cast to compute dtype at the end.
        w1c = jnp.zeros((self.IN_P, self.HID_P), jnp.float32)
        w1c = w1c.at[0:NUM_CONT, :hid].set(self.w1[0:NUM_CONT, :])
        d_off = NUM_CONT
        for t, seg_off, d in zip(tables, seg_offsets, embed_dims):
            folded = t @ self.w1[d_off:d_off + d, :]          # [num_X, hid]
            w1c = w1c.at[seg_off:seg_off + t.shape[0], :hid].set(folded)
            d_off += d
        w1c = w1c.at[self.ones_in_lane, :hid].set(self.b1)

        w2c = jnp.zeros((self.HID_P, self.HID_P), jnp.float32)
        w2c = w2c.at[:hid, :hid].set(self.w2)
        w2c = w2c.at[hid, :hid].set(self.b2)

        w3c = jnp.zeros((self.HID_P, self.OUT_P), jnp.float32)
        w3c = w3c.at[:hid, :out_dim].set(self.w3)
        w3c = w3c.at[hid, :out_dim].set(self.b3)

        cd = self.compute_dtype
        self.w1c, self.w2c, self.w3c = w1c.astype(cd), w2c.astype(cd), w3c.astype(cd)

    def _pad_input(self, x, batch_tile):
        x = x.astype(jnp.float32)
        B, F = x.shape
        Bp = _round_up(B, batch_tile)
        return jnp.zeros((Bp, self.IN_P), jnp.float32).at[:B, :F].set(x)

    def _choose_batch_tile(self, B):
        # Big tiles to amortize per-grid-step overhead; >=2 steps on large
        # batches so v7x's two TensorCores both get work via "parallel" axis.
        return min(self.MAX_BATCH_TILE, _round_up(B, 8))

    def _get_forward(self, B, bt):
        # One jitted (pad -> fused kernel -> slice) program per (batch, tile);
        # padding/slicing fuse on-device and dispatch overhead is amortized.
        key = (B, bt)
        fn = self._fwd_cache.get(key)
        if fn is None:
            seg_offsets = self.seg_offsets
            ones_in_lane = self.ones_in_lane
            hid_lane = self.hidden_dim
            out_dim = self.output_dim
            compute_dtype = self.compute_dtype
            pad = self._pad_input

            @jax.jit
            def fwd(x, w1c, w2c, w3c):
                xp = pad(x, bt)
                out = fused_mlp_pallas(
                    xp, w1c, w2c, w3c,
                    seg_offsets=seg_offsets, ones_in_lane=ones_in_lane,
                    hid_lane=hid_lane, batch_tile=bt,
                    compute_dtype=compute_dtype)
                return out[:B, :out_dim]

            fn = fwd
            self._fwd_cache[key] = fn
        return fn

    def __call__(self, x):
        B = x.shape[0]
        bt = self._choose_batch_tile(B)
        return self._get_forward(B, bt)(x, self.w1c, self.w2c, self.w3c)

    # bf16-matched pure-JAX reference (same folded algorithm, same dtypes).
    def reference_matched(self, x):
        B = x.shape[0]
        bt = self._choose_batch_tile(B)
        xp = self._pad_input(x, bt)
        out = _fused_mlp_math(
            xp, self.w1c, self.w2c, self.w3c,
            seg_offsets=self.seg_offsets, ones_in_lane=self.ones_in_lane,
            hid_lane=self.hidden_dim, compute_dtype=self.compute_dtype)
        return out[:B, :self.output_dim]

    # Exact f32 PyTorch-equivalent reference (gather + concat + 3 linears).
    def reference(self, x):
        continuous = x[:, 0:NUM_CONT]
        idx = x[:, NUM_CONT:NUM_CONT + 5].astype(jnp.int32)
        feats = jnp.concatenate([
            continuous,
            jnp.take(self.bin_embed, idx[:, 0], axis=0),
            jnp.take(self.bout_embed, idx[:, 1], axis=0),
            jnp.take(self.pin_embed, idx[:, 2], axis=0),
            jnp.take(self.pout_embed, idx[:, 3], axis=0),
            jnp.take(self.proto_embed, idx[:, 4], axis=0),
        ], axis=-1)
        h = jnp.maximum(feats @ self.w1 + self.b1, 0.0)
        h = jnp.maximum(h @ self.w2 + self.b2, 0.0)
        return h @ self.w3 + self.b3


if __name__ == "__main__":
    key = jax.random.PRNGKey(0)
    (k_param, k_cont, k_bin, k_bout, k_pin, k_pout, k_proto,
     k_cont2, k_cat2) = jax.random.split(key, 9)

    # Small, forward-consistent sizes.
    output_dim = 6
    num_bin, embed_dim_bin = 16, 8
    num_bout, embed_dim_bout = 16, 8
    num_pin, embed_dim_pin = 32, 8
    num_pout, embed_dim_pout = 32, 8
    num_proto, embed_dim_proto = 4, 4
    nums = [num_bin, num_bout, num_pin, num_pout, num_proto]

    model = NetworkDetectionModelPallas(
        k_param, output_dim,
        embed_dim_bin, num_bin,
        embed_dim_bout, num_bout,
        embed_dim_pin, num_pin,
        embed_dim_pout, num_pout,
        embed_dim_proto, num_proto,
    )

    def make_x(kc, kk, B):
        continuous = jax.random.normal(kc, (B, NUM_CONT), jnp.float32)
        cat_keys = jax.random.split(kk, 5)
        cat = jnp.stack([
            jax.random.randint(cat_keys[j], (B,), 0, nums[j]) for j in range(5)
        ], axis=-1).astype(jnp.float32)
        return jnp.concatenate([continuous, cat], axis=-1)   # [B, 9]

    # --- small batch (single grid step) ---
    B = 16
    x = make_x(k_cont, k_bin, B)
    out = jax.block_until_ready(model(x))
    assert out.shape == (B, output_dim)
    assert jnp.allclose(out, model.reference_matched(x), atol=1e-2, rtol=1e-2), \
        "Pallas output mismatch vs bf16-matched reference"
    assert jnp.allclose(out, model.reference(x), atol=1e-1, rtol=1e-1), \
        "Pallas output mismatch vs f32 reference"

    # --- larger, non-aligned batch (exercises padding + 2-step parallel grid) ---
    B2 = 1000
    x2 = make_x(k_cont2, k_cat2, B2)
    out2 = jax.block_until_ready(model(x2))
    assert out2.shape == (B2, output_dim)
    assert jnp.allclose(out2, model.reference_matched(x2), atol=1e-2, rtol=1e-2), \
        "Pallas output mismatch vs bf16-matched reference (large batch)"
    assert jnp.allclose(out2, model.reference(x2), atol=1e-1, rtol=1e-1), \
        "Pallas output mismatch vs f32 reference (large batch)"

    # Repeat call hits the jitted-cache path (no retrace / re-dispatch cost).
    out_again = jax.block_until_ready(model(x))
    assert jnp.allclose(out_again, out)

    print("KERNEL_OK")
</pallas_src>

<mosaic_0001>
module attributes {stable_mosaic.version = 11 : i64} {
  func.func @_fused_mlp_kernel(%arg0: i32, %arg1: memref<16x128xf32, #tpu.memory_space<vmem>>, %arg2: memref<128x128xbf16, #tpu.memory_space<vmem>>, %arg3: memref<128x128xbf16, #tpu.memory_space<vmem>>, %arg4: memref<128x128xbf16, #tpu.memory_space<vmem>>, %arg5: memref<16x128xf32, #tpu.memory_space<vmem>>) attributes {dimension_semantics = [#tpu.dimension_semantics<parallel>], iteration_bounds = array<i64: 1>, scalar_prefetch = 0 : i64, scratch_operands = 0 : i64, tpu.core_type = #tpu.core_type<tc>, window_params = [{transform_indices = @transform_0, window_bounds = array<i64: 16, 128>}, {pipeline_mode = #tpu.pipeline_mode<synchronous>, transform_indices = @transform_1, window_bounds = array<i64: 128, 128>}, {pipeline_mode = #tpu.pipeline_mode<synchronous>, transform_indices = @transform_2, window_bounds = array<i64: 128, 128>}, {pipeline_mode = #tpu.pipeline_mode<synchronous>, transform_indices = @transform_3, window_bounds = array<i64: 128, 128>}, {transform_indices = @transform_4, window_bounds = array<i64: 16, 128>}]} {
    %c0 = arith.constant 0 : index
    %c0_0 = arith.constant 0 : index
    %0 = vector.load %arg1[%c0, %c0_0] : memref<16x128xf32, #tpu.memory_space<vmem>>, vector<16x128xf32>
    %c0_1 = arith.constant 0 : index
    %c0_2 = arith.constant 0 : index
    %1 = vector.load %arg2[%c0_1, %c0_2] : memref<128x128xbf16, #tpu.memory_space<vmem>>, vector<128x128xbf16>
    %c0_3 = arith.constant 0 : index
    %c0_4 = arith.constant 0 : index
    %2 = vector.load %arg3[%c0_3, %c0_4] : memref<128x128xbf16, #tpu.memory_space<vmem>>, vector<128x128xbf16>
    %c0_5 = arith.constant 0 : index
    %c0_6 = arith.constant 0 : index
    %3 = vector.load %arg4[%c0_5, %c0_6] : memref<128x128xbf16, #tpu.memory_space<vmem>>, vector<128x128xbf16>
    %4 = tpu.iota {dimensions = array<i32: 1>} : vector<16x128xi32>
    %c104_i32 = arith.constant 104 : i32
    %5 = vector.broadcast %c104_i32 : i32 to vector<16x128xi32>
    %6 = arith.cmpi eq, %4, %5 : vector<16x128xi32>
    %7 = vector.extract_strided_slice %0 {offsets = [0, 4], sizes = [16, 1], strides = [1, 1]} : vector<16x128xf32> to vector<16x1xf32>
    %8 = arith.fptosi %7 : vector<16x1xf32> to vector<16x1xi32>
    %c4_i32 = arith.constant 4 : i32
    %9 = vector.broadcast %c4_i32 : i32 to vector<16x1xi32>
    %10 = arith.addi %8, %9 : vector<16x1xi32>
    %11 = vector.broadcast %10 : vector<16x1xi32> to vector<16x128xi32>
    %12 = arith.cmpi eq, %4, %11 : vector<16x128xi32>
    %13 = arith.ori %6, %12 : vector<16x128xi1>
    %14 = vector.extract_strided_slice %0 {offsets = [0, 5], sizes = [16, 1], strides = [1, 1]} : vector<16x128xf32> to vector<16x1xf32>
    %15 = arith.fptosi %14 : vector<16x1xf32> to vector<16x1xi32>
    %c20_i32 = arith.constant 20 : i32
    %16 = vector.broadcast %c20_i32 : i32 to vector<16x1xi32>
    %17 = arith.addi %15, %16 : vector<16x1xi32>
    %18 = vector.broadcast %17 : vector<16x1xi32> to vector<16x128xi32>
    %19 = arith.cmpi eq, %4, %18 : vector<16x128xi32>
    %20 = arith.ori %13, %19 : vector<16x128xi1>
    %21 = vector.extract_strided_slice %0 {offsets = [0, 6], sizes = [16, 1], strides = [1, 1]} : vector<16x128xf32> to vector<16x1xf32>
    %22 = arith.fptosi %21 : vector<16x1xf32> to vector<16x1xi32>
    %c36_i32 = arith.constant 36 : i32
    %23 = vector.broadcast %c36_i32 : i32 to vector<16x1xi32>
    %24 = arith.addi %22, %23 : vector<16x1xi32>
    %25 = vector.broadcast %24 : vector<16x1xi32> to vector<16x128xi32>
    %26 = arith.cmpi eq, %4, %25 : vector<16x128xi32>
    %27 = arith.ori %20, %26 : vector<16x128xi1>
    %28 = vector.extract_strided_slice %0 {offsets = [0, 7], sizes = [16, 1], strides = [1, 1]} : vector<16x128xf32> to vector<16x1xf32>
    %29 = arith.fptosi %28 : vector<16x1xf32> to vector<16x1xi32>
    %c68_i32 = arith.constant 68 : i32
    %30 = vector.broadcast %c68_i32 : i32 to vector<16x1xi32>
    %31 = arith.addi %29, %30 : vector<16x1xi32>
    %32 = vector.broadcast %31 : vector<16x1xi32> to vector<16x128xi32>
    %33 = arith.cmpi eq, %4, %32 : vector<16x128xi32>
    %34 = arith.ori %27, %33 : vector<16x128xi1>
    %35 = vector.extract_strided_slice %0 {offsets = [0, 8], sizes = [16, 1], strides = [1, 1]} : vector<16x128xf32> to vector<16x1xf32>
    %36 = arith.fptosi %35 : vector<16x1xf32> to vector<16x1xi32>
    %c100_i32 = arith.constant 100 : i32
    %37 = vector.broadcast %c100_i32 : i32 to vector<16x1xi32>
    %38 = arith.addi %36, %37 : vector<16x1xi32>
    %39 = vector.broadcast %38 : vector<16x1xi32> to vector<16x128xi32>
    %40 = arith.cmpi eq, %4, %39 : vector<16x128xi32>
    %41 = arith.ori %34, %40 : vector<16x128xi1>
    %c4_i32_7 = arith.constant 4 : i32
    %42 = vector.broadcast %c4_i32_7 : i32 to vector<16x128xi32>
    %43 = arith.cmpi slt, %4, %42 : vector<16x128xi32>
    %cst = arith.constant 1.000000e+00 : f32
    %cst_8 = arith.constant 0.000000e+00 : f32
    %44 = vector.broadcast %cst : f32 to vector<16x128xf32>
    %45 = vector.broadcast %cst_8 : f32 to vector<16x128xf32>
    %46 = arith.select %41, %44, %45 : vector<16x128xi1>, vector<16x128xf32>
    %47 = arith.select %43, %0, %46 : vector<16x128xi1>, vector<16x128xf32>
    %48 = arith.truncf %47 : vector<16x128xf32> to vector<16x128xbf16>
    %cst_9 = arith.constant dense<0.000000e+00> : vector<16x128xf32>
    %49 = tpu.matmul %48, %1, %cst_9 {dimension_numbers = #tpu.dot_dimension_numbers<[1], [0], [0], [1], [0, 0, 1, 1], [], []>} : vector<16x128xbf16>, vector<128x128xbf16>, vector<16x128xf32> -> vector<16x128xf32>
    %cst_10 = arith.constant 0.000000e+00 : f32
    %50 = vector.broadcast %cst_10 : f32 to vector<16x128xf32>
    %51 = arith.maximumf %49, %50 : vector<16x128xf32>
    %52 = tpu.iota {dimensions = array<i32: 1>} : vector<16x128xi32>
    %c28_i32 = arith.constant 28 : i32
    %53 = vector.broadcast %c28_i32 : i32 to vector<16x128xi32>
    %54 = arith.cmpi eq, %52, %53 : vector<16x128xi32>
    %cst_11 = arith.constant 1.000000e+00 : f32
    %55 = vector.broadcast %cst_11 : f32 to vector<16x128xf32>
    %56 = arith.select %54, %55, %51 : vector<16x128xi1>, vector<16x128xf32>
    %57 = arith.truncf %56 : vector<16x128xf32> to vector<16x128xbf16>
    %cst_12 = arith.constant dense<0.000000e+00> : vector<16x128xf32>
    %58 = tpu.matmul %57, %2, %cst_12 {dimension_numbers = #tpu.dot_dimension_numbers<[1], [0], [0], [1], [0, 0, 1, 1], [], []>} : vector<16x128xbf16>, vector<128x128xbf16>, vector<16x128xf32> -> vector<16x128xf32>
    %cst_13 = arith.constant 0.000000e+00 : f32
    %59 = vector.broadcast %cst_13 : f32 to vector<16x128xf32>
    %60 = arith.maximumf %58, %59 : vector<16x128xf32>
    %c28_i32_14 = arith.constant 28 : i32
    %61 = vector.broadcast %c28_i32_14 : i32 to vector<16x128xi32>
    %62 = arith.cmpi eq, %52, %61 : vector<16x128xi32>
    %cst_15 = arith.constant 1.000000e+00 : f32
    %63 = vector.broadcast %cst_15 : f32 to vector<16x128xf32>
    %64 = arith.select %62, %63, %60 : vector<16x128xi1>, vector<16x128xf32>
    %65 = arith.truncf %64 : vector<16x128xf32> to vector<16x128xbf16>
    %cst_16 = arith.constant dense<0.000000e+00> : vector<16x128xf32>
    %66 = tpu.matmul %65, %3, %cst_16 {dimension_numbers = #tpu.dot_dimension_numbers<[1], [0], [0], [1], [0, 0, 1, 1], [], []>} : vector<16x128xbf16>, vector<128x128xbf16>, vector<16x128xf32> -> vector<16x128xf32>
    %c0_17 = arith.constant 0 : index
    %c0_18 = arith.constant 0 : index
    %67 = vector.load %arg5[%c0_17, %c0_18] : memref<16x128xf32, #tpu.memory_space<vmem>>, vector<16x128xf32>
    tpu.vector_store %arg5[%c0_17, %c0_18], %66 {strides = array<i32>} : memref<16x128xf32, #tpu.memory_space<vmem>>, vector<16x128xf32>,
    return
  }
  func.func @transform_0(%arg0: i32) -> (i32, i32) {
    %c0_i32 = arith.constant 0 : i32
    %c0_i32_0 = arith.constant 0 : i32
    return %arg0, %c0_i32 : i32, i32
  }
  func.func @transform_1(%arg0: i32) -> (i32, i32) {
    %c0_i32 = arith.constant 0 : i32
    %c0_i32_0 = arith.constant 0 : i32
    %c0_i32_1 = arith.constant 0 : i32
    return %c0_i32, %c0_i32_0 : i32, i32
  }
  func.func @transform_2(%arg0: i32) -> (i32, i32) {
    %c0_i32 = arith.constant 0 : i32
    %c0_i32_0 = arith.constant 0 : i32
    %c0_i32_1 = arith.constant 0 : i32
    return %c0_i32, %c0_i32_0 : i32, i32
  }
  func.func @transform_3(%arg0: i32) -> (i32, i32) {
    %c0_i32 = arith.constant 0 : i32
    %c0_i32_0 = arith.constant 0 : i32
    %c0_i32_1 = arith.constant 0 : i32
    return %c0_i32, %c0_i32_0 : i32, i32
  }
  func.func @transform_4(%arg0: i32) -> (i32, i32) {
    %c0_i32 = arith.constant 0 : i32
    %c0_i32_0 = arith.constant 0 : i32
    return %arg0, %c0_i32 : i32, i32
  }
}

</mosaic_0001>

<llo_original>
// kernel: fwd.1
$region0: #{fwd.1}
  #allocation0 [shape = 'u32[]', space=smem, size = 0x4, offset = 0x4, fixed_abs, tag = 'smem constant byte address 0x4 - core index']
  #allocation1 [shape = 'u32[72,128]{1,0:T(1,128)}', space=vmem, size = 0x9000, scoped, tag = 'internal scratch']
  %s0 = inlined_call_operand.vmem [shape: f32[16,128], index: 0, kind: input, shape index: {}]
  %s1 = inlined_call_operand.vmem [shape: bf16[128,128], index: 1, kind: input, shape index: {}]
  %s2 = inlined_call_operand.hbm [shape: bf16[128,128], index: 2, kind: input, shape index: {}]
  %s3 = inlined_call_operand.hbm [shape: bf16[128,128], index: 3, kind: input, shape index: {}]
  %s4 = inlined_call_operand.vmem [shape: f32[16,128], index: 4, kind: output, shape index: {}]
  %s5 = sld [smem:[#allocation0]]
  $region34: #{fwd.1} parent=0
    _
  %s7 = ssub.s32 1, %s5
  %s8 = scalar_select 0, %s7, %s5
  $region1: #{fwd.1} parent=0
    #allocation2 [shape = 'u8[32768]{0}', space=vmem, size = 0x8000, scoped, tag = 'input window, operand 2, single buffered']
    #allocation3 [shape = 's32[1]{0}', space=sflag, size = 0x4, scoped, tag = 'scoped memory for fwd.1']
    #allocation4 [shape = 'u8[32768]{0}', space=vmem, size = 0x8000, scoped, tag = 'input window, operand 3, single buffered']
    #allocation5 [shape = 's32[1]{0}', space=sflag, size = 0x4, scoped, tag = 'scoped memory for fwd.1']
    %9 = vsyncpa [#allocation3], 0
    %10 = vsyncpa [#allocation5], 0
    // Predicated region
    $region2: #{fwd.1} parent=1 // pred_check
      _
    $region3: #{fwd.1} parent=1 // pred_check_branch
      %12 = sbr.rel (0) target = $region5
    $region4: #{fwd.1} parent=1 // pred_region
      _
    $region5: #{fwd.1} parent=1 // pred_fallthru
      _
    // Predicated region
    $region6: #{fwd.1} parent=1 // pred_check
      _
    $region7: #{fwd.1} parent=1 // pred_check_branch
      %14 = sbr.rel (0) target = $region9
    $region8: #{fwd.1} parent=1 // pred_region
      _
    $region9: #{fwd.1} parent=1 // pred_fallthru
      _
    // Predicated region
    $region10: #{fwd.1} parent=1 // pred_check
      _
    $region11: #{fwd.1} parent=1 // pred_check_branch
      %16 = sbr.rel (0) target = $region13
    $region12: #{fwd.1} parent=1 // pred_region
      %18 = vsyncadd [#allocation3], 0
      %s19 = sshll.u32 %s2, 4
      %s20 = int_to_ptr.hbm [resolvable:$true] %s19
      %s21 = sshll.u32 [#allocation2], 4
      %s22 = int_to_ptr.vmem [resolvable:$true] %s21
      %27 = dma.hbm_to_vmem [thread:$0]  %s20, 1024, %s22, [#allocation3], 64, 64, 4
    $region13: #{fwd.1} parent=1 // pred_fallthru
      _
    // Predicated region
    $region14: #{fwd.1} parent=1 // pred_check
      _
    $region15: #{fwd.1} parent=1 // pred_check_branch
      %29 = sbr.rel (0) target = $region17
    $region16: #{fwd.1} parent=1 // pred_region
      %31 = vsyncadd [#allocation5], 0
      %s32 = sshll.u32 %s3, 4
      %s33 = int_to_ptr.hbm [resolvable:$true] %s32
      %s34 = sshll.u32 [#allocation4], 4
      %s35 = int_to_ptr.vmem [resolvable:$true] %s34
      %40 = dma.hbm_to_vmem [thread:$0]  %s33, 1024, %s35, [#allocation5], 64, 64, 4
    $region17: #{fwd.1} parent=1 // pred_fallthru
      _
    // Predicated region
    $region18: #{fwd.1} parent=1 // pred_check
      _
    $region19: #{fwd.1} parent=1 // pred_check_branch
      %42 = sbr.rel (0) target = $region21
    $region20: #{fwd.1} parent=1 // pred_region
      %44 = dma.done [#allocation3], 1024
    $region21: #{fwd.1} parent=1 // pred_fallthru
      _
    // Predicated region
    $region22: #{fwd.1} parent=1 // pred_check
      _
    $region23: #{fwd.1} parent=1 // pred_check_branch
      %46 = sbr.rel (0) target = $region25
    $region24: #{fwd.1} parent=1 // pred_region
      %48 = dma.done [#allocation5], 1024
    $region25: #{fwd.1} parent=1 // pred_fallthru
      _
    %v49 = vld [vmem:[%s0] sm:$0xff]
    %v50 = vld [vmem:[%s0 + $0x8] sm:$0xff]
    %v51 = vld [vmem:[%s1] sm:$0xf]
    %v52 = vld [vmem:[%s1 + $0x4] sm:$0xf]
    %v53 = vld [vmem:[%s1 + $0x8] sm:$0xf]
    %v54 = vld [vmem:[%s1 + $0xc] sm:$0xf]
    %v55 = vld [vmem:[%s1 + $0x10] sm:$0xf]
    %v56 = vld [vmem:[%s1 + $0x14] sm:$0xf]
    %v57 = vld [vmem:[%s1 + $0x18] sm:$0xf]
    %v58 = vld [vmem:[%s1 + $0x1c] sm:$0xf]
    %v59 = vld [vmem:[%s1 + $0x20] sm:$0xf]
    %v60 = vld [vmem:[%s1 + $0x24] sm:$0xf]
    %v61 = vld [vmem:[%s1 + $0x28] sm:$0xf]
    %v62 = vld [vmem:[%s1 + $0x2c] sm:$0xf]
    %v63 = vld [vmem:[%s1 + $0x30] sm:$0xf]
    %v64 = vld [vmem:[%s1 + $0x34] sm:$0xf]
    %v65 = vld [vmem:[%s1 + $0x38] sm:$0xf]
    %v66 = vld [vmem:[%s1 + $0x3c] sm:$0xf]
    %v67 = vld [vmem:[#allocation2] sm:$0xf]
    %v68 = vld [vmem:[#allocation2 + $0x4] sm:$0xf]
    %v69 = vld [vmem:[#allocation2 + $0x8] sm:$0xf]
    %v70 = vld [vmem:[#allocation2 + $0xc] sm:$0xf]
    %v71 = vld [vmem:[#allocation2 + $0x10] sm:$0xf]
    %v72 = vld [vmem:[#allocation2 + $0x14] sm:$0xf]
    %v73 = vld [vmem:[#allocation2 + $0x18] sm:$0xf]
    %v74 = vld [vmem:[#allocation2 + $0x1c] sm:$0xf]
    %v75 = vld [vmem:[#allocation2 + $0x20] sm:$0xf]
    %v76 = vld [vmem:[#allocation2 + $0x24] sm:$0xf]
    %v77 = vld [vmem:[#allocation2 + $0x28] sm:$0xf]
    %v78 = vld [vmem:[#allocation2 + $0x2c] sm:$0xf]
    %v79 = vld [vmem:[#allocation2 + $0x30] sm:$0xf]
    %v80 = vld [vmem:[#allocation2 + $0x34] sm:$0xf]
    %v81 = vld [vmem:[#allocation2 + $0x38] sm:$0xf]
    %v82 = vld [vmem:[#allocation2 + $0x3c] sm:$0xf]
    %v83 = vld [vmem:[#allocation4] sm:$0xf]
    %v84 = vld [vmem:[#allocation4 + $0x4] sm:$0xf]
    %v85 = vld [vmem:[#allocation4 + $0x8] sm:$0xf]
    %v86 = vld [vmem:[#allocation4 + $0xc] sm:$0xf]
    %v87 = vld [vmem:[#allocation4 + $0x10] sm:$0xf]
    %v88 = vld [vmem:[#allocation4 + $0x14] sm:$0xf]
    %v89 = vld [vmem:[#allocation4 + $0x18] sm:$0xf]
    %v90 = vld [vmem:[#allocation4 + $0x1c] sm:$0xf]
    %v91 = vld [vmem:[#allocation4 + $0x20] sm:$0xf]
    %v92 = vld [vmem:[#allocation4 + $0x24] sm:$0xf]
    %v93 = vld [vmem:[#allocation4 + $0x28] sm:$0xf]
    %v94 = vld [vmem:[#allocation4 + $0x2c] sm:$0xf]
    %v95 = vld [vmem:[#allocation4 + $0x30] sm:$0xf]
    %v96 = vld [vmem:[#allocation4 + $0x34] sm:$0xf]
    %v97 = vld [vmem:[#allocation4 + $0x38] sm:$0xf]
    %v98 = vld [vmem:[#allocation4 + $0x3c] sm:$0xf]
    %v99 = vlaneseq
    %v100 = vand.u32 %v99, 127
    %vm101 = vcmp.eq.s32.totalorder %v100, 104
    %v102 = vcvt.f32.s32.to.zero.pseudo %v49
    %v103 = vcvt.f32.s32.to.zero.pseudo %v50
    %v104 = vadd.s32 %v102, 4
    %v105 = vadd.s32 %v103, 4
    %106 = vset.pattern.permute.xlu0 4
    %107 = vperm.xlu0 %106, %v104
    %v108 = vpop.permute.xlu0 %107
    %109 = vset.pattern.permute.xlu0 4
    %110 = vperm.xlu0 %109, %v105
    %v111 = vpop.permute.xlu0 %110
    %vm112 = vcmp.eq.s32.totalorder %v100, %v108
    %vm113 = vcmp.eq.s32.totalorder %v100, %v111
    %vm114 = vmor %vm101, %vm112
    %vm115 = vmor %vm101, %vm113
    %v116 = vadd.s32 %v102, 20
    %v117 = vadd.s32 %v103, 20
    %118 = vset.pattern.permute.xlu0 5
    %119 = vperm.xlu0 %118, %v116
    %v120 = vpop.permute.xlu0 %119
    %121 = vset.pattern.permute.xlu0 5
    %122 = vperm.xlu0 %121, %v117
    %v123 = vpop.permute.xlu0 %122
    %vm124 = vcmp.eq.s32.totalorder %v100, %v120
    %vm125 = vcmp.eq.s32.totalorder %v100, %v123
    %vm126 = vmor %vm114, %vm124
    %vm127 = vmor %vm115, %vm125
    %v128 = vadd.s32 %v102, 36
    %v129 = vadd.s32 %v103, 36
    %130 = vset.pattern.permute.xlu0 6
    %131 = vperm.xlu0 %130, %v128
    %v132 = vpop.permute.xlu0 %131
    %133 = vset.pattern.permute.xlu0 6
    %134 = vperm.xlu0 %133, %v129
    %v135 = vpop.permute.xlu0 %134
    %vm136 = vcmp.eq.s32.totalorder %v100, %v132
    %vm137 = vcmp.eq.s32.totalorder %v100, %v135
    %vm138 = vmor %vm126, %vm136
    %vm139 = vmor %vm127, %vm137
    %v140 = vadd.s32 %v102, 68
    %v141 = vadd.s32 %v103, 68
    %142 = vset.pattern.permute.xlu0 7
    %143 = vperm.xlu0 %142, %v140
    %v144 = vpop.permute.xlu0 %143
    %145 = vset.pattern.permute.xlu0 7
    %146 = vperm.xlu0 %145, %v141
    %v147 = vpop.permute.xlu0 %146
    %vm148 = vcmp.eq.s32.totalorder %v100, %v144
    %vm149 = vcmp.eq.s32.totalorder %v100, %v147
    %vm150 = vmor %vm138, %vm148
    %vm151 = vmor %vm139, %vm149
    %v152 = vadd.s32 %v102, 100
    %v153 = vadd.s32 %v103, 100
    %154 = vset.pattern.permute.xlu0 8
    %155 = vperm.xlu0 %154, %v152
    %v156 = vpop.permute.xlu0 %155
    %157 = vset.pattern.permute.xlu0 8
    %158 = vperm.xlu0 %157, %v153
    %v159 = vpop.permute.xlu0 %158
    %vm160 = vcmp.eq.s32.totalorder %v100, %v156
    %vm161 = vcmp.eq.s32.totalorder %v100, %v159
    %vm162 = vmor %vm150, %vm160
    %vm163 = vmor %vm151, %vm161
    %vm164 = vcmp.lt.s32.totalorder %v100, 4
    %v165 = vsel %vm162, 1.0, 0.0
    %v166 = vsel %vm163, 1.0, 0.0
    %v167 = vsel %vm164, %v49, %v165
    %v168 = vsel %vm164, %v50, %v166
    %v169 = vpack.c.bf16 %v168, %v167
    %v186 = vunpack.c.l.b16 %v51
    %v187 = vunpack.c.l.b16 %v52
    %v188 = vunpack.c.l.b16 %v53
    %v189 = vunpack.c.l.b16 %v54
    %v190 = vunpack.c.l.b16 %v55
    %v191 = vunpack.c.l.b16 %v56
    %v192 = vunpack.c.l.b16 %v57
    %v193 = vunpack.c.l.b16 %v58
    %v194 = vunpack.c.l.b16 %v59
    %v195 = vunpack.c.l.b16 %v60
    %v196 = vunpack.c.l.b16 %v61
    %v197 = vunpack.c.l.b16 %v62
    %v198 = vunpack.c.l.b16 %v63
    %v199 = vunpack.c.l.b16 %v64
    %v200 = vunpack.c.l.b16 %v65
    %v201 = vunpack.c.l.b16 %v66
    %v202 = vpack.c.b16 %v187, %v186
    %v203 = vpack.c.b16 %v189, %v188
    %v204 = vpack.c.b16 %v191, %v190
    %v205 = vpack.c.b16 %v193, %v192
    %v206 = vpack.c.b16 %v195, %v194
    %v207 = vpack.c.b16 %v197, %v196
    %v208 = vpack.c.b16 %v199, %v198
    %v209 = vpack.c.b16 %v201, %v200
    %218 = vmatpush.bf16.msra.mxu0 %v209
    %219 = vmatpush.bf16.msra.mxu0 %v208
    %220 = vmatpush.bf16.msra.mxu0 %v207
    %221 = vmatpush.bf16.msra.mxu0 %v206
    %222 = vmatpush.bf16.msra.mxu0 %v205
    %223 = vmatpush.bf16.msra.mxu0 %v204
    %224 = vmatpush.bf16.msra.mxu0 %v203
    %225 = vmatpush.bf16.msra.mxu0 %v202
    %226 = vmatmul.bf16.gmra.mxu0 %v169
    %v227 = vpop.f32.mrf.mxu0
    %v228 = vadd.f32 0.0, %v227
    %v229 = vpop.f32.mrf.mxu0
    %v230 = vadd.f32 0.0, %v229
    %231 = vdwg.mxu0
    %v232 = vmax.f32 %v228, 0.0
    %v233 = vmax.f32 %v230, 0.0
    %vm234 = vcmp.eq.s32.totalorder %v100, 28
    %v235 = vsel %vm234, 1.0, %v232
    %v236 = vsel %vm234, 1.0, %v233
    %v237 = vpack.c.bf16 %v236, %v235
    %v254 = vunpack.c.l.b16 %v67
    %v255 = vunpack.c.l.b16 %v68
    %v256 = vunpack.c.l.b16 %v69
    %v257 = vunpack.c.l.b16 %v70
    %v258 = vunpack.c.l.b16 %v71
    %v259 = vunpack.c.l.b16 %v72
    %v260 = vunpack.c.l.b16 %v73
    %v261 = vunpack.c.l.b16 %v74
    %v262 = vunpack.c.l.b16 %v75
    %v263 = vunpack.c.l.b16 %v76
    %v264 = vunpack.c.l.b16 %v77
    %v265 = vunpack.c.l.b16 %v78
    %v266 = vunpack.c.l.b16 %v79
    %v267 = vunpack.c.l.b16 %v80
    %v268 = vunpack.c.l.b16 %v81
    %v269 = vunpack.c.l.b16 %v82
    %v270 = vpack.c.b16 %v255, %v254
    %v271 = vpack.c.b16 %v257, %v256
    %v272 = vpack.c.b16 %v259, %v258
    %v273 = vpack.c.b16 %v261, %v260
    %v274 = vpack.c.b16 %v263, %v262
    %v275 = vpack.c.b16 %v265, %v264
    %v276 = vpack.c.b16 %v267, %v266
    %v277 = vpack.c.b16 %v269, %v268
    %286 = vmatpush.bf16.msra.mxu0 %v277
    %287 = vmatpush.bf16.msra.mxu0 %v276
    %288 = vmatpush.bf16.msra.mxu0 %v275
    %289 = vmatpush.bf16.msra.mxu0 %v274
    %290 = vmatpush.bf16.msra.mxu0 %v273
    %291 = vmatpush.bf16.msra.mxu0 %v272
    %292 = vmatpush.bf16.msra.mxu0 %v271
    %293 = vmatpush.bf16.msra.mxu0 %v270
    %294 = vmatmul.bf16.gmra.mxu0 %v237
    %v295 = vpop.f32.mrf.mxu0
    %v296 = vadd.f32 0.0, %v295
    %v297 = vpop.f32.mrf.mxu0
    %v298 = vadd.f32 0.0, %v297
    %299 = vdwg.mxu0
    %v300 = vmax.f32 %v296, 0.0
    %v301 = vmax.f32 %v298, 0.0
    %v302 = vsel %vm234, 1.0, %v300
    %v303 = vsel %vm234, 1.0, %v301
    %v304 = vpack.c.bf16 %v303, %v302
    %v321 = vunpack.c.l.b16 %v83
    %v322 = vunpack.c.l.b16 %v84
    %v323 = vunpack.c.l.b16 %v85
    %v324 = vunpack.c.l.b16 %v86
    %v325 = vunpack.c.l.b16 %v87
    %v326 = vunpack.c.l.b16 %v88
    %v327 = vunpack.c.l.b16 %v89
    %v328 = vunpack.c.l.b16 %v90
    %v329 = vunpack.c.l.b16 %v91
    %v330 = vunpack.c.l.b16 %v92
    %v331 = vunpack.c.l.b16 %v93
    %v332 = vunpack.c.l.b16 %v94
    %v333 = vunpack.c.l.b16 %v95
    %v334 = vunpack.c.l.b16 %v96
    %v335 = vunpack.c.l.b16 %v97
    %v336 = vunpack.c.l.b16 %v98
    %v337 = vpack.c.b16 %v322, %v321
    %v338 = vpack.c.b16 %v324, %v323
    %v339 = vpack.c.b16 %v326, %v325
    %v340 = vpack.c.b16 %v328, %v327
    %v341 = vpack.c.b16 %v330, %v329
    %v342 = vpack.c.b16 %v332, %v331
    %v343 = vpack.c.b16 %v334, %v333
    %v344 = vpack.c.b16 %v336, %v335
    %353 = vmatpush.bf16.msra.mxu0 %v344
    %354 = vmatpush.bf16.msra.mxu0 %v343
    %355 = vmatpush.bf16.msra.mxu0 %v342
    %356 = vmatpush.bf16.msra.mxu0 %v341
    %357 = vmatpush.bf16.msra.mxu0 %v340
    %358 = vmatpush.bf16.msra.mxu0 %v339
    %359 = vmatpush.bf16.msra.mxu0 %v338
    %360 = vmatpush.bf16.msra.mxu0 %v337
    %361 = vmatmul.bf16.gmra.mxu0 %v304
    %v362 = vpop.f32.mrf.mxu0
    %v363 = vadd.f32 0.0, %v362
    %v364 = vpop.f32.mrf.mxu0
    %v365 = vadd.f32 0.0, %v364
    %366 = vdwg.mxu0
    %367 = vst [vmem:[%s4] sm:$0xff] %v363
    %368 = vst [vmem:[%s4 + $0x8] sm:$0xff] %v365
    // Predicated region
    $region26: #{fwd.1} parent=1 // pred_check
      _
    $region27: #{fwd.1} parent=1 // pred_check_branch
      %370 = sbr.rel (0) target = $region29
    $region28: #{fwd.1} parent=1 // pred_region
      _
    $region29: #{fwd.1} parent=1 // pred_fallthru
      _
    // Predicated region
    $region30: #{fwd.1} parent=1 // pred_check
      _
    $region31: #{fwd.1} parent=1 // pred_check_branch
      %372 = sbr.rel (0) target = $region33
    $region32: #{fwd.1} parent=1 // pred_region
      _
    $region33: #{fwd.1} parent=1 // pred_fallthru
      _
    %373 = vsyncpa [#allocation3], 1
    %374 = vsyncpa [#allocation5], 1

</llo_original>
